<compile_context>
chip_gen: v5e
topology: v5e:2x2
jax: 0.10.0
libtpu: 0.0.40
codegen_flags: <defaults>
</compile_context>

<pallas_src>
import functools

import jax
import jax.numpy as jnp
from jax.experimental import pallas as pl
from jax.experimental.pallas import tpu as pltpu

LANE = 128                            # lane-dense output slab width
H1, H2, H3, HB = 512, 256, 128, 128   # hidden widths (HB = fused 64+64 branch)


def _round_up(n, m):
    return ((n + m - 1) // m) * m


# ----------------------------------------------------------------------------
# Pallas kernel: full forward pass of MCTSNetwork over one batch tile
# ----------------------------------------------------------------------------
def mcts_kernel(x_ref,
                w1_ref, b1_ref,
                w2_ref, b2_ref,
                w3_ref, b3_ref,
                wbr_ref, bbr_ref,
                whd_ref, bhd_ref,
                out_ref, *, action_space):
    # layer_one -> layer_three: bf16 operands into the MXU, f32 accumulation, ReLU.
    # x arrives already in bf16 (cast at the wrapper boundary).
    h = jnp.dot(x_ref[...], w1_ref[...],
                preferred_element_type=jnp.float32) + b1_ref[...]
    h = jnp.maximum(h, 0.0)
    h = jnp.dot(h.astype(jnp.bfloat16), w2_ref[...],
                preferred_element_type=jnp.float32) + b2_ref[...]
    h = jnp.maximum(h, 0.0)
    h = jnp.dot(h.astype(jnp.bfloat16), w3_ref[...],
                preferred_element_type=jnp.float32) + b3_ref[...]
    h = jnp.maximum(h, 0.0)

    # Fused action/value branch: concat([action_layer, value_layer]) -> 128 lanes.
    br = jnp.dot(h.astype(jnp.bfloat16), wbr_ref[...],
                 preferred_element_type=jnp.float32) + bbr_ref[...]
    br = jnp.maximum(br, 0.0)

    # Fused block-diagonal heads, lane-padded to 128:
    #   lanes [0, A)   -> action scores (from ax = br[:, :64])
    #   lane  A        -> state value   (from vx = br[:, 64:])
    #   lanes (A, 128) -> zero-weight padding
    head = jnp.dot(br.astype(jnp.bfloat16), whd_ref[...],
                   preferred_element_type=jnp.float32) + bhd_ref[...]

    lane = jax.lax.broadcasted_iota(jnp.int32, head.shape, dimension=1)
    # Numerically-stable softmax over the real action lanes only.
    scores = jnp.where(lane < action_space, head, -jnp.inf)
    m = jnp.max(scores, axis=-1, keepdims=True)
    e = jnp.exp(scores - m)                       # masked lanes -> exp(-inf) = 0
    denom = jnp.sum(e, axis=-1, keepdims=True)
    probs = e * pl.reciprocal(denom, approx=True)

    # Single lane-dense 128-wide output slab (unmasked vst):
    # probs in lanes [0, A), raw value in lane A, zeros elsewhere.
    out_ref[...] = jnp.where(lane == action_space, head, probs)


# ----------------------------------------------------------------------------
# Parameter construction (deterministic, PyTorch-Linear-style init, f32)
# ----------------------------------------------------------------------------
def init_linear(key, fan_in, fan_out):
    kw, kb = jax.random.split(key)
    bound = 1.0 / jnp.sqrt(jnp.float32(fan_in))
    w = jax.random.uniform(kw, (fan_in, fan_out), jnp.float32, -bound, bound)
    b = jax.random.uniform(kb, (1, fan_out), jnp.float32, -bound, bound)
    return w, b


def init_params(key, input_size, action_space):
    keys = jax.random.split(key, 7)
    w1, b1 = init_linear(keys[0], input_size, H1)      # layer_one
    w2, b2 = init_linear(keys[1], H1, H2)              # layer_two
    w3, b3 = init_linear(keys[2], H2, H3)              # layer_three
    wa, ba = init_linear(keys[3], H3, 64)              # action_layer
    wah, bah = init_linear(keys[4], 64, action_space)  # action_head
    wv, bv = init_linear(keys[5], H3, 64)               # value_layer
    wvh, bvh = init_linear(keys[6], 64, 1)               # value_head
    return (w1, b1, w2, b2, w3, b3, wa, ba, wah, bah, wv, bv, wvh, bvh)


def fuse_params(params, action_space):
    """Fuse branch/head weights into lane-dense blocks; weights bf16, biases f32."""
    (w1, b1, w2, b2, w3, b3, wa, ba, wah, bah, wv, bv, wvh, bvh) = params
    # Branch fusion: 128 -> (64 | 64) = 128 lanes.
    wbr = jnp.concatenate([wa, wv], axis=1)                       # (128, 128)
    bbr = jnp.concatenate([ba, bv], axis=1)                       # (1, 128)
    # Head fusion: block-diagonal 128 -> (A | 1), padded to 128 lanes.
    whd = jnp.zeros((HB, LANE), jnp.float32)
    whd = whd.at[:64, :action_space].set(wah)
    whd = whd.at[64:, action_space].set(wvh[:, 0])
    bhd = jnp.zeros((1, LANE), jnp.float32)
    bhd = bhd.at[0, :action_space].set(bah[0])
    bhd = bhd.at[0, action_space].set(bvh[0, 0])

    bf16 = lambda w: w.astype(jnp.bfloat16)
    return (bf16(w1), b1, bf16(w2), b2, bf16(w3), b3,
            bf16(wbr), bbr, bf16(whd), bhd)


# ----------------------------------------------------------------------------
# Batch tile selection:
#   * split B (nearly) evenly -> padding limited to < 8 rows per tile on average
#   * at least 2 (even) grid steps for B >= 16 so v7x's two TCs both get work
#   * tiles as large as possible (<= max_tile) to amortize per-grid-step overhead
# ----------------------------------------------------------------------------
def _choose_batch_tile(B, max_tile=1024):
    if B < 16:
        return max(8, _round_up(B, 8)), 1
    n_tiles = max(2, pl.cdiv(B, max_tile))
    if n_tiles % 2:                       # even tile count -> balanced 2-TC split
        n_tiles += 1
    TM = _round_up(pl.cdiv(B, n_tiles), 8)
    grid = pl.cdiv(B, TM)
    return TM, grid


# ----------------------------------------------------------------------------
# Wrapper: batch grid, weight-resident BlockSpecs, lane-dense output slab
# ----------------------------------------------------------------------------
def mcts_forward(x, kernel_params, action_space, *, max_batch_tile=1024):
    assert action_space + 1 <= LANE, "action_space + 1 must fit in the 128-lane slab"
    B, F = x.shape

    TM, grid = _choose_batch_tile(B, max_batch_tile)
    B_pad = TM * grid

    # bf16 at the boundary: halves x DMA bytes, removes an in-kernel pack pass.
    x = x.astype(jnp.bfloat16)
    if B_pad != B:
        x = jnp.pad(x, ((0, B_pad - B), (0, 0)))

    def full_spec(arr):
        # Whole array resident in VMEM; constant block index -> no re-DMA across grid.
        return pl.BlockSpec(arr.shape, lambda i: (0, 0))

    (w1, b1, w2, b2, w3, b3, wbr, bbr, whd, bhd) = kernel_params

    # VMEM footprint at TM=1024 is ~8 MiB (weights ~0.5 MiB resident, double-buffered
    # x/out tiles + f32 intermediates); 32 MiB cap is safe on v5e/v6e/v7x alike.
    out = pl.pallas_call(
        functools.partial(mcts_kernel, action_space=action_space),
        out_shape=jax.ShapeDtypeStruct((B_pad, LANE), jnp.float32),
        grid_spec=pltpu.PrefetchScalarGridSpec(
            num_scalar_prefetch=0,
            grid=(grid,),
            in_specs=[
                pl.BlockSpec((TM, F), lambda i: (i, 0)),    # x: tiled over batch
                full_spec(w1), full_spec(b1),
                full_spec(w2), full_spec(b2),
                full_spec(w3), full_spec(b3),
                full_spec(wbr), full_spec(bbr),
                full_spec(whd), full_spec(bhd),
            ],
            out_specs=pl.BlockSpec((TM, LANE), lambda i: (i, 0)),
        ),
        compiler_params=pltpu.CompilerParams(
            dimension_semantics=("parallel",),       # shard batch across TCs (v7x)
            vmem_limit_bytes=32 * 1024 * 1024,
        ),
    )(x, *kernel_params)

    probs = out[:B, :action_space]
    value = out[:B, action_space:action_space + 1]
    return probs, value


# ----------------------------------------------------------------------------
# Pure-JAX reference (matches kernel's bf16-operand / f32-accumulate math)
# ----------------------------------------------------------------------------
def mcts_reference(x, params):
    (w1, b1, w2, b2, w3, b3, wa, ba, wah, bah, wv, bv, wvh, bvh) = params

    def lin(a, w, b):
        return jnp.dot(a.astype(jnp.bfloat16), w.astype(jnp.bfloat16),
                       preferred_element_type=jnp.float32) + b

    h = jax.nn.relu(lin(x, w1, b1))
    h = jax.nn.relu(lin(h, w2, b2))
    h = jax.nn.relu(lin(h, w3, b3))
    ax = jax.nn.relu(lin(h, wa, ba))
    vx = jax.nn.relu(lin(h, wv, bv))
    scores = lin(ax, wah, bah)
    values = lin(vx, wvh, bvh)
    return jax.nn.softmax(scores, axis=-1), values


if __name__ == "__main__":
    input_size = 32
    action_space = 8

    key = jax.random.PRNGKey(0)
    kx, kp = jax.random.split(key)

    params = init_params(kp, input_size, action_space)
    kernel_params = fuse_params(params, action_space)

    # Small canonical batch (single grid step).
    batch = 2
    x = jax.random.normal(kx, (batch, input_size), jnp.float32)
    probs, value = mcts_forward(x, kernel_params, action_space)
    jax.block_until_ready((probs, value))

    ref_probs, ref_value = mcts_reference(x, params)
    assert probs.shape == (batch, action_space)
    assert value.shape == (batch, 1)
    assert jnp.allclose(probs, ref_probs, atol=1e-2, rtol=1e-2)
    assert jnp.allclose(value, ref_value, atol=1e-2, rtol=1e-2)
    assert jnp.allclose(jnp.sum(probs, axis=-1), 1.0, atol=1e-2)

    # Non-tile-aligned batch: exercises the even-split tiling + multi-step grid path.
    batch2 = 300
    x2 = jax.random.normal(jax.random.PRNGKey(1), (batch2, input_size), jnp.float32)
    probs2, value2 = mcts_forward(x2, kernel_params, action_space)
    jax.block_until_ready((probs2, value2))
    ref_probs2, ref_value2 = mcts_reference(x2, params)
    assert probs2.shape == (batch2, action_space)
    assert value2.shape == (batch2, 1)
    assert jnp.allclose(probs2, ref_probs2, atol=1e-2, rtol=1e-2)
    assert jnp.allclose(value2, ref_value2, atol=1e-2, rtol=1e-2)
    assert jnp.allclose(jnp.sum(probs2, axis=-1), 1.0, atol=1e-2)

    print("KERNEL_OK")
</pallas_src>

<mosaic_0001>
module attributes {stable_mosaic.version = 11 : i64} {
  func.func @mcts_kernel(%arg0: i32, %arg1: memref<8x32xbf16, #tpu.memory_space<vmem>>, %arg2: memref<32x512xbf16, #tpu.memory_space<vmem>>, %arg3: memref<1x512xf32, #tpu.memory_space<vmem>>, %arg4: memref<512x256xbf16, #tpu.memory_space<vmem>>, %arg5: memref<1x256xf32, #tpu.memory_space<vmem>>, %arg6: memref<256x128xbf16, #tpu.memory_space<vmem>>, %arg7: memref<1x128xf32, #tpu.memory_space<vmem>>, %arg8: memref<128x128xbf16, #tpu.memory_space<vmem>>, %arg9: memref<1x128xf32, #tpu.memory_space<vmem>>, %arg10: memref<128x128xbf16, #tpu.memory_space<vmem>>, %arg11: memref<1x128xf32, #tpu.memory_space<vmem>>, %arg12: memref<8x128xf32, #tpu.memory_space<vmem>>) attributes {dimension_semantics = [#tpu.dimension_semantics<parallel>], iteration_bounds = array<i64: 1>, scalar_prefetch = 0 : i64, scratch_operands = 0 : i64, tpu.core_type = #tpu.core_type<tc>, window_params = [{transform_indices = @transform_0, window_bounds = array<i64: 8, 32>}, {pipeline_mode = #tpu.pipeline_mode<synchronous>, transform_indices = @transform_1, window_bounds = array<i64: 32, 512>}, {pipeline_mode = #tpu.pipeline_mode<synchronous>, transform_indices = @transform_2, window_bounds = array<i64: 1, 512>}, {pipeline_mode = #tpu.pipeline_mode<synchronous>, transform_indices = @transform_3, window_bounds = array<i64: 512, 256>}, {pipeline_mode = #tpu.pipeline_mode<synchronous>, transform_indices = @transform_4, window_bounds = array<i64: 1, 256>}, {pipeline_mode = #tpu.pipeline_mode<synchronous>, transform_indices = @transform_5, window_bounds = array<i64: 256, 128>}, {pipeline_mode = #tpu.pipeline_mode<synchronous>, transform_indices = @transform_6, window_bounds = array<i64: 1, 128>}, {pipeline_mode = #tpu.pipeline_mode<synchronous>, transform_indices = @transform_7, window_bounds = array<i64: 128, 128>}, {pipeline_mode = #tpu.pipeline_mode<synchronous>, transform_indices = @transform_8, window_bounds = array<i64: 1, 128>}, {pipeline_mode = #tpu.pipeline_mode<synchronous>, transform_indices = @transform_9, window_bounds = array<i64: 128, 128>}, {pipeline_mode = #tpu.pipeline_mode<synchronous>, transform_indices = @transform_10, window_bounds = array<i64: 1, 128>}, {transform_indices = @transform_11, window_bounds = array<i64: 8, 128>}]} {
    %c0 = arith.constant 0 : index
    %c0_0 = arith.constant 0 : index
    %0 = vector.load %arg1[%c0, %c0_0] : memref<8x32xbf16, #tpu.memory_space<vmem>>, vector<8x32xbf16>
    %c0_1 = arith.constant 0 : index
    %c0_2 = arith.constant 0 : index
    %1 = vector.load %arg2[%c0_1, %c0_2] : memref<32x512xbf16, #tpu.memory_space<vmem>>, vector<32x512xbf16>
    %cst = arith.constant dense<0.000000e+00> : vector<8x512xf32>
    %2 = tpu.matmul %0, %1, %cst {dimension_numbers = #tpu.dot_dimension_numbers<[1], [0], [0], [1], [0, 0, 1, 1], [], []>} : vector<8x32xbf16>, vector<32x512xbf16>, vector<8x512xf32> -> vector<8x512xf32>
    %c0_3 = arith.constant 0 : index
    %c0_4 = arith.constant 0 : index
    %3 = vector.load %arg3[%c0_3, %c0_4] : memref<1x512xf32, #tpu.memory_space<vmem>>, vector<1x512xf32>
    %4 = vector.broadcast %3 : vector<1x512xf32> to vector<8x512xf32>
    %5 = arith.addf %2, %4 : vector<8x512xf32>
    %cst_5 = arith.constant 0.000000e+00 : f32
    %6 = vector.broadcast %cst_5 : f32 to vector<8x512xf32>
    %7 = arith.maximumf %5, %6 : vector<8x512xf32>
    %8 = arith.truncf %7 : vector<8x512xf32> to vector<8x512xbf16>
    %c0_6 = arith.constant 0 : index
    %c0_7 = arith.constant 0 : index
    %9 = vector.load %arg4[%c0_6, %c0_7] : memref<512x256xbf16, #tpu.memory_space<vmem>>, vector<512x256xbf16>
    %cst_8 = arith.constant dense<0.000000e+00> : vector<8x256xf32>
    %10 = tpu.matmul %8, %9, %cst_8 {dimension_numbers = #tpu.dot_dimension_numbers<[1], [0], [0], [1], [0, 0, 1, 1], [], []>} : vector<8x512xbf16>, vector<512x256xbf16>, vector<8x256xf32> -> vector<8x256xf32>
    %c0_9 = arith.constant 0 : index
    %c0_10 = arith.constant 0 : index
    %11 = vector.load %arg5[%c0_9, %c0_10] : memref<1x256xf32, #tpu.memory_space<vmem>>, vector<1x256xf32>
    %12 = vector.broadcast %11 : vector<1x256xf32> to vector<8x256xf32>
    %13 = arith.addf %10, %12 : vector<8x256xf32>
    %cst_11 = arith.constant 0.000000e+00 : f32
    %14 = vector.broadcast %cst_11 : f32 to vector<8x256xf32>
    %15 = arith.maximumf %13, %14 : vector<8x256xf32>
    %16 = arith.truncf %15 : vector<8x256xf32> to vector<8x256xbf16>
    %c0_12 = arith.constant 0 : index
    %c0_13 = arith.constant 0 : index
    %17 = vector.load %arg6[%c0_12, %c0_13] : memref<256x128xbf16, #tpu.memory_space<vmem>>, vector<256x128xbf16>
    %cst_14 = arith.constant dense<0.000000e+00> : vector<8x128xf32>
    %18 = tpu.matmul %16, %17, %cst_14 {dimension_numbers = #tpu.dot_dimension_numbers<[1], [0], [0], [1], [0, 0, 1, 1], [], []>} : vector<8x256xbf16>, vector<256x128xbf16>, vector<8x128xf32> -> vector<8x128xf32>
    %c0_15 = arith.constant 0 : index
    %c0_16 = arith.constant 0 : index
    %19 = vector.load %arg7[%c0_15, %c0_16] : memref<1x128xf32, #tpu.memory_space<vmem>>, vector<1x128xf32>
    %20 = vector.broadcast %19 : vector<1x128xf32> to vector<8x128xf32>
    %21 = arith.addf %18, %20 : vector<8x128xf32>
    %cst_17 = arith.constant 0.000000e+00 : f32
    %22 = vector.broadcast %cst_17 : f32 to vector<8x128xf32>
    %23 = arith.maximumf %21, %22 : vector<8x128xf32>
    %24 = arith.truncf %23 : vector<8x128xf32> to vector<8x128xbf16>
    %c0_18 = arith.constant 0 : index
    %c0_19 = arith.constant 0 : index
    %25 = vector.load %arg8[%c0_18, %c0_19] : memref<128x128xbf16, #tpu.memory_space<vmem>>, vector<128x128xbf16>
    %cst_20 = arith.constant dense<0.000000e+00> : vector<8x128xf32>
    %26 = tpu.matmul %24, %25, %cst_20 {dimension_numbers = #tpu.dot_dimension_numbers<[1], [0], [0], [1], [0, 0, 1, 1], [], []>} : vector<8x128xbf16>, vector<128x128xbf16>, vector<8x128xf32> -> vector<8x128xf32>
    %c0_21 = arith.constant 0 : index
    %c0_22 = arith.constant 0 : index
    %27 = vector.load %arg9[%c0_21, %c0_22] : memref<1x128xf32, #tpu.memory_space<vmem>>, vector<1x128xf32>
    %28 = vector.broadcast %27 : vector<1x128xf32> to vector<8x128xf32>
    %29 = arith.addf %26, %28 : vector<8x128xf32>
    %cst_23 = arith.constant 0.000000e+00 : f32
    %30 = vector.broadcast %cst_23 : f32 to vector<8x128xf32>
    %31 = arith.maximumf %29, %30 : vector<8x128xf32>
    %32 = arith.truncf %31 : vector<8x128xf32> to vector<8x128xbf16>
    %c0_24 = arith.constant 0 : index
    %c0_25 = arith.constant 0 : index
    %33 = vector.load %arg10[%c0_24, %c0_25] : memref<128x128xbf16, #tpu.memory_space<vmem>>, vector<128x128xbf16>
    %cst_26 = arith.constant dense<0.000000e+00> : vector<8x128xf32>
    %34 = tpu.matmul %32, %33, %cst_26 {dimension_numbers = #tpu.dot_dimension_numbers<[1], [0], [0], [1], [0, 0, 1, 1], [], []>} : vector<8x128xbf16>, vector<128x128xbf16>, vector<8x128xf32> -> vector<8x128xf32>
    %c0_27 = arith.constant 0 : index
    %c0_28 = arith.constant 0 : index
    %35 = vector.load %arg11[%c0_27, %c0_28] : memref<1x128xf32, #tpu.memory_space<vmem>>, vector<1x128xf32>
    %36 = vector.broadcast %35 : vector<1x128xf32> to vector<8x128xf32>
    %37 = arith.addf %34, %36 : vector<8x128xf32>
    %38 = tpu.iota {dimensions = array<i32: 1>} : vector<8x128xi32>
    %c8_i32 = arith.constant 8 : i32
    %39 = vector.broadcast %c8_i32 : i32 to vector<8x128xi32>
    %40 = arith.cmpi slt, %38, %39 : vector<8x128xi32>
    %cst_29 = arith.constant 0xFF800000 : f32
    %41 = vector.broadcast %cst_29 : f32 to vector<8x128xf32>
    %42 = arith.select %40, %37, %41 : vector<8x128xi1>, vector<8x128xf32>
    %cst_30 = arith.constant dense<0xFF800000> : vector<8xf32>
    %43 = vector.multi_reduction <maximumf>, %42, %cst_30 [1] : vector<8x128xf32> to vector<8xf32>
    %44 = vector.shape_cast %43 : vector<8xf32> to vector<8x1xf32>
    %45 = vector.broadcast %44 : vector<8x1xf32> to vector<8x128xf32>
    %46 = arith.subf %42, %45 : vector<8x128xf32>
    %47 = math.exp %46 : vector<8x128xf32>
    %cst_31 = arith.constant dense<0.000000e+00> : vector<8xf32>
    %48 = vector.multi_reduction <add>, %47, %cst_31 [1] : vector<8x128xf32> to vector<8xf32>
    %49 = vector.shape_cast %48 : vector<8xf32> to vector<8x1xf32>
    %50 = tpu.reciprocal %49 {approx = true} : vector<8x1xf32> -> vector<8x1xf32>
    %51 = vector.broadcast %50 : vector<8x1xf32> to vector<8x128xf32>
    %52 = arith.mulf %47, %51 : vector<8x128xf32>
    %c8_i32_32 = arith.constant 8 : i32
    %53 = vector.broadcast %c8_i32_32 : i32 to vector<8x128xi32>
    %54 = arith.cmpi eq, %38, %53 : vector<8x128xi32>
    %55 = arith.select %54, %37, %52 : vector<8x128xi1>, vector<8x128xf32>
    %c0_33 = arith.constant 0 : index
    %c0_34 = arith.constant 0 : index
    %56 = vector.load %arg12[%c0_33, %c0_34] : memref<8x128xf32, #tpu.memory_space<vmem>>, vector<8x128xf32>
    tpu.vector_store %arg12[%c0_33, %c0_34], %55 {strides = array<i32>} : memref<8x128xf32, #tpu.memory_space<vmem>>, vector<8x128xf32>,
    return
  }
  func.func @transform_0(%arg0: i32) -> (i32, i32) {
    %c0_i32 = arith.constant 0 : i32
    %c0_i32_0 = arith.constant 0 : i32
    return %arg0, %c0_i32 : i32, i32
  }
  func.func @transform_1(%arg0: i32) -> (i32, i32) {
    %c0_i32 = arith.constant 0 : i32
    %c0_i32_0 = arith.constant 0 : i32
    %c0_i32_1 = arith.constant 0 : i32
    return %c0_i32, %c0_i32_0 : i32, i32
  }
  func.func @transform_2(%arg0: i32) -> (i32, i32) {
    %c0_i32 = arith.constant 0 : i32
    %c0_i32_0 = arith.constant 0 : i32
    %c0_i32_1 = arith.constant 0 : i32
    return %c0_i32, %c0_i32_0 : i32, i32
  }
  func.func @transform_3(%arg0: i32) -> (i32, i32) {
    %c0_i32 = arith.constant 0 : i32
    %c0_i32_0 = arith.constant 0 : i32
    %c0_i32_1 = arith.constant 0 : i32
    return %c0_i32, %c0_i32_0 : i32, i32
  }
  func.func @transform_4(%arg0: i32) -> (i32, i32) {
    %c0_i32 = arith.constant 0 : i32
    %c0_i32_0 = arith.constant 0 : i32
    %c0_i32_1 = arith.constant 0 : i32
    return %c0_i32, %c0_i32_0 : i32, i32
  }
  func.func @transform_5(%arg0: i32) -> (i32, i32) {
    %c0_i32 = arith.constant 0 : i32
    %c0_i32_0 = arith.constant 0 : i32
    %c0_i32_1 = arith.constant 0 : i32
    return %c0_i32, %c0_i32_0 : i32, i32
  }
  func.func @transform_6(%arg0: i32) -> (i32, i32) {
    %c0_i32 = arith.constant 0 : i32
    %c0_i32_0 = arith.constant 0 : i32
    %c0_i32_1 = arith.constant 0 : i32
    return %c0_i32, %c0_i32_0 : i32, i32
  }
  func.func @transform_7(%arg0: i32) -> (i32, i32) {
    %c0_i32 = arith.constant 0 : i32
    %c0_i32_0 = arith.constant 0 : i32
    %c0_i32_1 = arith.constant 0 : i32
    return %c0_i32, %c0_i32_0 : i32, i32
  }
  func.func @transform_8(%arg0: i32) -> (i32, i32) {
    %c0_i32 = arith.constant 0 : i32
    %c0_i32_0 = arith.constant 0 : i32
    %c0_i32_1 = arith.constant 0 : i32
    return %c0_i32, %c0_i32_0 : i32, i32
  }
  func.func @transform_9(%arg0: i32) -> (i32, i32) {
    %c0_i32 = arith.constant 0 : i32
    %c0_i32_0 = arith.constant 0 : i32
    %c0_i32_1 = arith.constant 0 : i32
    return %c0_i32, %c0_i32_0 : i32, i32
  }
  func.func @transform_10(%arg0: i32) -> (i32, i32) {
    %c0_i32 = arith.constant 0 : i32
    %c0_i32_0 = arith.constant 0 : i32
    %c0_i32_1 = arith.constant 0 : i32
    return %c0_i32, %c0_i32_0 : i32, i32
  }
  func.func @transform_11(%arg0: i32) -> (i32, i32) {
    %c0_i32 = arith.constant 0 : i32
    %c0_i32_0 = arith.constant 0 : i32
    return %arg0, %c0_i32 : i32, i32
  }
}

</mosaic_0001>

<llo_original>
// kernel: tpu_custom_call.1
$region0: #{tpu_custom_call.1}
  #allocation0 [shape = 'u32[]', space=smem, size = 0x4, offset = 0x4, fixed_abs, tag = 'smem constant byte address 0x4 - core index']
  #allocation1 [shape = 'u32[72,128]{1,0:T(1,128)}', space=vmem, size = 0x9000, scoped, tag = 'internal scratch']
  %s0 = inlined_call_operand.hbm [shape: bf16[8,32], index: 0, kind: input, shape index: {}]
  %s1 = inlined_call_operand.hbm [shape: bf16[32,512], index: 1, kind: input, shape index: {}]
  %s2 = inlined_call_operand.hbm [shape: f32[1,512], index: 2, kind: input, shape index: {}]
  %s3 = inlined_call_operand.hbm [shape: bf16[512,256], index: 3, kind: input, shape index: {}]
  %s4 = inlined_call_operand.vmem [shape: f32[1,256], index: 4, kind: input, shape index: {}]
  %s5 = inlined_call_operand.hbm [shape: bf16[256,128], index: 5, kind: input, shape index: {}]
  %s6 = inlined_call_operand.vmem [shape: f32[1,128], index: 6, kind: input, shape index: {}]
  %s7 = inlined_call_operand.hbm [shape: bf16[128,128], index: 7, kind: input, shape index: {}]
  %s8 = inlined_call_operand.vmem [shape: f32[1,128], index: 8, kind: input, shape index: {}]
  %s9 = inlined_call_operand.hbm [shape: bf16[128,128], index: 9, kind: input, shape index: {}]
  %s10 = inlined_call_operand.vmem [shape: f32[1,128], index: 10, kind: input, shape index: {}]
  %s11 = inlined_call_operand.hbm [shape: f32[8,128], index: 11, kind: output, shape index: {}]
  %s12 = sld [smem:[#allocation0]]
  $region82: #{tpu_custom_call.1} parent=0
    _
  %s14 = ssub.s32 1, %s12
  %s15 = scalar_select 0, %s14, %s12
  $region1: #{tpu_custom_call.1} parent=0
    #allocation2 [shape = 'u8[2048]{0}', space=vmem, size = 0x800, scoped, tag = 'input window, operand 0, single buffered']
    #allocation3 [shape = 's32[1]{0}', space=sflag, size = 0x4, scoped, tag = 'scoped memory for tpu_custom_call.1']
    #allocation4 [shape = 's32[1]{0}', space=sflag, size = 0x4, scoped, tag = 'scoped memory for tpu_custom_call.1']
    #allocation5 [shape = 'u8[32768]{0}', space=vmem, size = 0x8000, scoped, tag = 'input window, operand 1, single buffered']
    #allocation6 [shape = 's32[1]{0}', space=sflag, size = 0x4, scoped, tag = 'scoped memory for tpu_custom_call.1']
    #allocation7 [shape = 'u8[2048]{0}', space=vmem, size = 0x800, scoped, tag = 'input window, operand 2, single buffered']
    #allocation8 [shape = 'u8[262144]{0}', space=vmem, size = 0x40000, scoped, tag = 'input window, operand 3, single buffered']
    #allocation9 [shape = 's32[1]{0}', space=sflag, size = 0x4, scoped, tag = 'scoped memory for tpu_custom_call.1']
    #allocation10 [shape = 'u8[65536]{0}', space=vmem, size = 0x10000, scoped, tag = 'input window, operand 5, single buffered']
    #allocation11 [shape = 'u8[32768]{0}', space=vmem, size = 0x8000, scoped, tag = 'input window, operand 7, single buffered']
    #allocation12 [shape = 's32[1]{0}', space=sflag, size = 0x4, scoped, tag = 'scoped memory for tpu_custom_call.1']
    #allocation13 [shape = 'u8[32768]{0}', space=vmem, size = 0x8000, scoped, tag = 'input window, operand 9, single buffered']
    #allocation14 [shape = 'u8[4096]{0}', space=vmem, size = 0x1000, scoped, tag = 'output window, operand 0, single buffered']
    %16 = vsyncpa [#allocation3], 0
    %17 = vsyncpa [#allocation6], 0
    %18 = vsyncpa [#allocation9], 0
    %19 = vsyncpa [#allocation12], 0
    %20 = vsyncpa [#allocation4], 0
    // Predicated region
    $region2: #{tpu_custom_call.1} parent=1 // pred_check
      _
    $region3: #{tpu_custom_call.1} parent=1 // pred_check_branch
      %22 = sbr.rel (0) target = $region5
    $region4: #{tpu_custom_call.1} parent=1 // pred_region
      %24 = vsyncadd [#allocation3], 0
      %s26 = sshll.u32 %s0, 4
      %s27 = int_to_ptr.hbm [resolvable:$true] %s26
      %s28 = sshll.u32 [#allocation2], 4
      %s29 = int_to_ptr.vmem [resolvable:$true] %s28
      %31 = dma.hbm_to_vmem [thread:$0]  %s27, 64, %s29, [#allocation3]
    $region5: #{tpu_custom_call.1} parent=1 // pred_fallthru
      _
    // Predicated region
    $region6: #{tpu_custom_call.1} parent=1 // pred_check
      _
    $region7: #{tpu_custom_call.1} parent=1 // pred_check_branch
      %33 = sbr.rel (0) target = $region9
    $region8: #{tpu_custom_call.1} parent=1 // pred_region
      %35 = vsyncadd [#allocation6], 0
      %s36 = sshll.u32 %s1, 4
      %s37 = int_to_ptr.hbm [resolvable:$true] %s36
      %s38 = sshll.u32 [#allocation5], 4
      %s39 = int_to_ptr.vmem [resolvable:$true] %s38
      %44 = dma.hbm_to_vmem [thread:$0]  %s37, 1024, %s39, [#allocation6], 256, 256, 16
    $region9: #{tpu_custom_call.1} parent=1 // pred_fallthru
      _
    // Predicated region
    $region10: #{tpu_custom_call.1} parent=1 // pred_check
      _
    $region11: #{tpu_custom_call.1} parent=1 // pred_check_branch
      %46 = sbr.rel (0) target = $region13
    $region12: #{tpu_custom_call.1} parent=1 // pred_region
      %48 = vsyncadd [#allocation6], 0
      %s50 = sshll.u32 %s2, 4
      %s51 = int_to_ptr.hbm [resolvable:$true] %s50
      %s52 = sshll.u32 [#allocation7], 4
      %s53 = int_to_ptr.vmem [resolvable:$true] %s52
      %55 = dma.hbm_to_vmem [thread:$0]  %s51, 64, %s53, [#allocation6]
    $region13: #{tpu_custom_call.1} parent=1 // pred_fallthru
      _
    // Predicated region
    $region14: #{tpu_custom_call.1} parent=1 // pred_check
      _
    $region15: #{tpu_custom_call.1} parent=1 // pred_check_branch
      %57 = sbr.rel (0) target = $region17
    $region16: #{tpu_custom_call.1} parent=1 // pred_region
      %59 = vsyncadd [#allocation9], 0
      %s60 = sshll.u32 %s3, 4
      %s61 = int_to_ptr.hbm [resolvable:$true] %s60
      %s62 = sshll.u32 [#allocation8], 4
      %s63 = int_to_ptr.vmem [resolvable:$true] %s62
      %68 = dma.hbm_to_vmem [thread:$0]  %s61, 8192, %s63, [#allocation9], 128, 128, 8
    $region17: #{tpu_custom_call.1} parent=1 // pred_fallthru
      _
    // Predicated region
    $region18: #{tpu_custom_call.1} parent=1 // pred_check
      _
    $region19: #{tpu_custom_call.1} parent=1 // pred_check_branch
      %70 = sbr.rel (0) target = $region21
    $region20: #{tpu_custom_call.1} parent=1 // pred_region
      _
    $region21: #{tpu_custom_call.1} parent=1 // pred_fallthru
      _
    // Predicated region
    $region22: #{tpu_custom_call.1} parent=1 // pred_check
      _
    $region23: #{tpu_custom_call.1} parent=1 // pred_check_branch
      %72 = sbr.rel (0) target = $region25
    $region24: #{tpu_custom_call.1} parent=1 // pred_region
      %74 = vsyncadd [#allocation9], 0
      %s75 = sshll.u32 %s5, 4
      %s76 = int_to_ptr.hbm [resolvable:$true] %s75
      %s77 = sshll.u32 [#allocation10], 4
      %s78 = int_to_ptr.vmem [resolvable:$true] %s77
      %83 = dma.hbm_to_vmem [thread:$0]  %s76, 2048, %s78, [#allocation9], 64, 64, 4
    $region25: #{tpu_custom_call.1} parent=1 // pred_fallthru
      _
    // Predicated region
    $region26: #{tpu_custom_call.1} parent=1 // pred_check
      _
    $region27: #{tpu_custom_call.1} parent=1 // pred_check_branch
      %85 = sbr.rel (0) target = $region29
    $region28: #{tpu_custom_call.1} parent=1 // pred_region
      _
    $region29: #{tpu_custom_call.1} parent=1 // pred_fallthru
      _
    // Predicated region
    $region30: #{tpu_custom_call.1} parent=1 // pred_check
      _
    $region31: #{tpu_custom_call.1} parent=1 // pred_check_branch
      %87 = sbr.rel (0) target = $region33
    $region32: #{tpu_custom_call.1} parent=1 // pred_region
      %89 = vsyncadd [#allocation12], 0
      %s90 = sshll.u32 %s7, 4
      %s91 = int_to_ptr.hbm [resolvable:$true] %s90
      %s92 = sshll.u32 [#allocation11], 4
      %s93 = int_to_ptr.vmem [resolvable:$true] %s92
      %98 = dma.hbm_to_vmem [thread:$0]  %s91, 1024, %s93, [#allocation12], 64, 64, 4
    $region33: #{tpu_custom_call.1} parent=1 // pred_fallthru
      _
    // Predicated region
    $region34: #{tpu_custom_call.1} parent=1 // pred_check
      _
    $region35: #{tpu_custom_call.1} parent=1 // pred_check_branch
      %100 = sbr.rel (0) target = $region37
    $region36: #{tpu_custom_call.1} parent=1 // pred_region
      _
    $region37: #{tpu_custom_call.1} parent=1 // pred_fallthru
      _
    // Predicated region
    $region38: #{tpu_custom_call.1} parent=1 // pred_check
      _
    $region39: #{tpu_custom_call.1} parent=1 // pred_check_branch
      %102 = sbr.rel (0) target = $region41
    $region40: #{tpu_custom_call.1} parent=1 // pred_region
      %104 = vsyncadd [#allocation12], 0
      %s105 = sshll.u32 %s9, 4
      %s106 = int_to_ptr.hbm [resolvable:$true] %s105
      %s107 = sshll.u32 [#allocation13], 4
      %s108 = int_to_ptr.vmem [resolvable:$true] %s107
      %113 = dma.hbm_to_vmem [thread:$0]  %s106, 1024, %s108, [#allocation12], 64, 64, 4
    $region41: #{tpu_custom_call.1} parent=1 // pred_fallthru
      _
    // Predicated region
    $region42: #{tpu_custom_call.1} parent=1 // pred_check
      _
    $region43: #{tpu_custom_call.1} parent=1 // pred_check_branch
      %115 = sbr.rel (0) target = $region45
    $region44: #{tpu_custom_call.1} parent=1 // pred_region
      _
    $region45: #{tpu_custom_call.1} parent=1 // pred_fallthru
      _
    // Predicated region
    $region46: #{tpu_custom_call.1} parent=1 // pred_check
      _
    $region47: #{tpu_custom_call.1} parent=1 // pred_check_branch
      %117 = sbr.rel (0) target = $region49
    $region48: #{tpu_custom_call.1} parent=1 // pred_region
      %119 = dma.done [#allocation3], 64
    $region49: #{tpu_custom_call.1} parent=1 // pred_fallthru
      _
    // Predicated region
    $region50: #{tpu_custom_call.1} parent=1 // pred_check
      _
    $region51: #{tpu_custom_call.1} parent=1 // pred_check_branch
      %121 = sbr.rel (0) target = $region53
    $region52: #{tpu_custom_call.1} parent=1 // pred_region
      %123 = dma.done [#allocation6], 1024
    $region53: #{tpu_custom_call.1} parent=1 // pred_fallthru
      _
    // Predicated region
    $region54: #{tpu_custom_call.1} parent=1 // pred_check
      _
    $region55: #{tpu_custom_call.1} parent=1 // pred_check_branch
      %125 = sbr.rel (0) target = $region57
    $region56: #{tpu_custom_call.1} parent=1 // pred_region
      %127 = dma.done [#allocation6], 64
    $region57: #{tpu_custom_call.1} parent=1 // pred_fallthru
      _
    // Predicated region
    $region58: #{tpu_custom_call.1} parent=1 // pred_check
      _
    $region59: #{tpu_custom_call.1} parent=1 // pred_check_branch
      %129 = sbr.rel (0) target = $region61
    $region60: #{tpu_custom_call.1} parent=1 // pred_region
      %131 = dma.done [#allocation9], 8192
    $region61: #{tpu_custom_call.1} parent=1 // pred_fallthru
      _
    // Predicated region
    $region62: #{tpu_custom_call.1} parent=1 // pred_check
      _
    $region63: #{tpu_custom_call.1} parent=1 // pred_check_branch
      %133 = sbr.rel (0) target = $region65
    $region64: #{tpu_custom_call.1} parent=1 // pred_region
      %135 = dma.done [#allocation9], 2048
    $region65: #{tpu_custom_call.1} parent=1 // pred_fallthru
      _
    // Predicated region
    $region66: #{tpu_custom_call.1} parent=1 // pred_check
      _
    $region67: #{tpu_custom_call.1} parent=1 // pred_check_branch
      %137 = sbr.rel (0) target = $region69
    $region68: #{tpu_custom_call.1} parent=1 // pred_region
      %139 = dma.done [#allocation12], 1024
    $region69: #{tpu_custom_call.1} parent=1 // pred_fallthru
      _
    // Predicated region
    $region70: #{tpu_custom_call.1} parent=1 // pred_check
      _
    $region71: #{tpu_custom_call.1} parent=1 // pred_check_branch
      %141 = sbr.rel (0) target = $region73
    $region72: #{tpu_custom_call.1} parent=1 // pred_region
      %143 = dma.done [#allocation12], 1024
    $region73: #{tpu_custom_call.1} parent=1 // pred_fallthru
      _
    %v145 = vld [vmem:[#allocation2] sm:$0xf]
    %v146 = vld [vmem:[#allocation5] sm:$0xff]
    %v147 = vld [vmem:[#allocation5 + $0x8] sm:$0xff]
    %v148 = vld [vmem:[#allocation5 + $0x10] sm:$0xff]
    %v149 = vld [vmem:[#allocation5 + $0x18] sm:$0xff]
    %v150 = vld [vmem:[#allocation5 + $0x20] sm:$0xff]
    %v151 = vld [vmem:[#allocation5 + $0x28] sm:$0xff]
    %v152 = vld [vmem:[#allocation5 + $0x30] sm:$0xff]
    %v153 = vld [vmem:[#allocation5 + $0x38] sm:$0xff]
    %v154 = vld [vmem:[#allocation7] sm:$0xf]
    %v156 = vperm.slane %v154, 0
    %v157 = vperm.slane %v154, 1
    %v158 = vperm.slane %v154, 2
    %v159 = vperm.slane %v154, 3
    %v172 = vunpack.c.l.b16 %v146
    %v173 = vunpack.c.h.b16 %v146
    %v174 = vunpack.c.l.b16 %v147
    %v175 = vunpack.c.h.b16 %v147
    %v176 = vunpack.c.l.b16 %v148
    %v177 = vunpack.c.h.b16 %v148
    %v178 = vunpack.c.l.b16 %v149
    %v179 = vunpack.c.h.b16 %v149
    %v180 = vunpack.c.l.b16 %v150
    %v181 = vunpack.c.h.b16 %v150
    %v182 = vunpack.c.l.b16 %v151
    %v183 = vunpack.c.h.b16 %v151
    %v184 = vunpack.c.l.b16 %v152
    %v185 = vunpack.c.h.b16 %v152
    %v186 = vunpack.c.l.b16 %v153
    %v187 = vunpack.c.h.b16 %v153
    %v188 = vpack.c.b16 %v176, %v172
    %v189 = vpack.c.b16 %v177, %v173
    %v190 = vpack.c.b16 %v178, %v174
    %v191 = vpack.c.b16 %v179, %v175
    %v192 = vpack.c.b16 %v184, %v180
    %v193 = vpack.c.b16 %v185, %v181
    %v194 = vpack.c.b16 %v186, %v182
    %v195 = vpack.c.b16 %v187, %v183
    %vm204 = vcmask 261120
    %v206 = vsel %vm204, %v145, 0
    %208 = vmatpush.bf16.msra.mxu0 0
    %209 = vmatpush.bf16.msra.mxu0 0
    %210 = vmatpush.bf16.msra.mxu0 0
    %211 = vmatpush.bf16.msra.mxu0 0
    %212 = vmatpush.bf16.msra.mxu0 0
    %213 = vmatpush.bf16.msra.mxu0 0
    %214 = vmatpush.bf16.msra.mxu0 %v192
    %215 = vmatpush.bf16.msra.mxu0 %v188
    %216 = vmatmul.bf16.gmra.mxu0 %v206
    %v217 = vpop.f32.mrf.mxu0
    %v218 = vadd.f32 %v156, %v217
    %v219 = vpop.f32.mrf.mxu0
    %220 = vdwg.mxu0
    %221 = vmatpush.bf16.msra.mxu0 0
    %222 = vmatpush.bf16.msra.mxu0 0
    %223 = vmatpush.bf16.msra.mxu0 0
    %224 = vmatpush.bf16.msra.mxu0 0
    %225 = vmatpush.bf16.msra.mxu0 0
    %226 = vmatpush.bf16.msra.mxu0 0
    %227 = vmatpush.bf16.msra.mxu0 %v193
    %228 = vmatpush.bf16.msra.mxu0 %v189
    %229 = vmatmul.bf16.gmra.mxu0 %v206
    %v230 = vpop.f32.mrf.mxu0
    %v231 = vadd.f32 %v157, %v230
    %v232 = vpop.f32.mrf.mxu0
    %233 = vdwg.mxu0
    %234 = vmatpush.bf16.msra.mxu0 0
    %235 = vmatpush.bf16.msra.mxu0 0
    %236 = vmatpush.bf16.msra.mxu0 0
    %237 = vmatpush.bf16.msra.mxu0 0
    %238 = vmatpush.bf16.msra.mxu0 0
    %239 = vmatpush.bf16.msra.mxu0 0
    %240 = vmatpush.bf16.msra.mxu0 %v194
    %241 = vmatpush.bf16.msra.mxu0 %v190
    %242 = vmatmul.bf16.gmra.mxu0 %v206
    %v243 = vpop.f32.mrf.mxu0
    %v244 = vadd.f32 %v158, %v243
    %v245 = vpop.f32.mrf.mxu0
    %246 = vdwg.mxu0
    %247 = vmatpush.bf16.msra.mxu0 0
    %248 = vmatpush.bf16.msra.mxu0 0
    %249 = vmatpush.bf16.msra.mxu0 0
    %250 = vmatpush.bf16.msra.mxu0 0
    %251 = vmatpush.bf16.msra.mxu0 0
    %252 = vmatpush.bf16.msra.mxu0 0
    %253 = vmatpush.bf16.msra.mxu0 %v195
    %254 = vmatpush.bf16.msra.mxu0 %v191
    %255 = vmatmul.bf16.gmra.mxu0 %v206
    %v256 = vpop.f32.mrf.mxu0
    %v257 = vadd.f32 %v159, %v256
    %v258 = vpop.f32.mrf.mxu0
    %259 = vdwg.mxu0
    %v260 = vmax.f32 %v218, 0.0
    %v261 = vmax.f32 %v231, 0.0
    %v262 = vmax.f32 %v244, 0.0
    %v263 = vmax.f32 %v257, 0.0
    %v264 = vpack.c.bf16 %v260, %v260
    %v265 = vpack.c.bf16 %v261, %v261
    %v266 = vpack.c.bf16 %v262, %v262
    %v267 = vpack.c.bf16 %v263, %v263
    %v268 = vld [vmem:[#allocation8] sm:$0xff]
    %v269 = vld [vmem:[#allocation8 + $0x8] sm:$0xff]
    %v270 = vld [vmem:[#allocation8 + $0x10] sm:$0xff]
    %v271 = vld [vmem:[#allocation8 + $0x18] sm:$0xff]
    %v272 = vld [vmem:[#allocation8 + $0x20] sm:$0xff]
    %v273 = vld [vmem:[#allocation8 + $0x28] sm:$0xff]
    %v274 = vld [vmem:[#allocation8 + $0x30] sm:$0xff]
    %v275 = vld [vmem:[#allocation8 + $0x38] sm:$0xff]
    %v276 = vld [vmem:[#allocation8 + $0x40] sm:$0xff]
    %v277 = vld [vmem:[#allocation8 + $0x48] sm:$0xff]
    %v278 = vld [vmem:[#allocation8 + $0x50] sm:$0xff]
    %v279 = vld [vmem:[#allocation8 + $0x58] sm:$0xff]
    %v280 = vld [vmem:[#allocation8 + $0x60] sm:$0xff]
    %v281 = vld [vmem:[#allocation8 + $0x68] sm:$0xff]
    %v282 = vld [vmem:[#allocation8 + $0x70] sm:$0xff]
    %v283 = vld [vmem:[#allocation8 + $0x78] sm:$0xff]
    %v284 = vld [vmem:[#allocation8 + $0x80] sm:$0xff]
    %v285 = vld [vmem:[#allocation8 + $0x88] sm:$0xff]
    %v286 = vld [vmem:[#allocation8 + $0x90] sm:$0xff]
    %v287 = vld [vmem:[#allocation8 + $0x98] sm:$0xff]
    %v288 = vld [vmem:[#allocation8 + $0xa0] sm:$0xff]
    %v289 = vld [vmem:[#allocation8 + $0xa8] sm:$0xff]
    %v290 = vld [vmem:[#allocation8 + $0xb0] sm:$0xff]
    %v291 = vld [vmem:[#allocation8 + $0xb8] sm:$0xff]
    %v292 = vld [vmem:[#allocation8 + $0xc0] sm:$0xff]
    %v293 = vld [vmem:[#allocation8 + $0xc8] sm:$0xff]
    %v294 = vld [vmem:[#allocation8 + $0xd0] sm:$0xff]
    %v295 = vld [vmem:[#allocation8 + $0xd8] sm:$0xff]
    %v296 = vld [vmem:[#allocation8 + $0xe0] sm:$0xff]
    %v297 = vld [vmem:[#allocation8 + $0xe8] sm:$0xff]
    %v298 = vld [vmem:[#allocation8 + $0xf0] sm:$0xff]
    %v299 = vld [vmem:[#allocation8 + $0xf8] sm:$0xff]
    %v300 = vld [vmem:[#allocation8 + $0x100] sm:$0xff]
    %v301 = vld [vmem:[#allocation8 + $0x108] sm:$0xff]
    %v302 = vld [vmem:[#allocation8 + $0x110] sm:$0xff]
    %v303 = vld [vmem:[#allocation8 + $0x118] sm:$0xff]
    %v304 = vld [vmem:[#allocation8 + $0x120] sm:$0xff]
    %v305 = vld [vmem:[#allocation8 + $0x128] sm:$0xff]
    %v306 = vld [vmem:[#allocation8 + $0x130] sm:$0xff]
    %v307 = vld [vmem:[#allocation8 + $0x138] sm:$0xff]
    %v308 = vld [vmem:[#allocation8 + $0x140] sm:$0xff]
    %v309 = vld [vmem:[#allocation8 + $0x148] sm:$0xff]
    %v310 = vld [vmem:[#allocation8 + $0x150] sm:$0xff]
    %v311 = vld [vmem:[#allocation8 + $0x158] sm:$0xff]
    %v312 = vld [vmem:[#allocation8 + $0x160] sm:$0xff]
    %v313 = vld [vmem:[#allocation8 + $0x168] sm:$0xff]
    %v314 = vld [vmem:[#allocation8 + $0x170] sm:$0xff]
    %v315 = vld [vmem:[#allocation8 + $0x178] sm:$0xff]
    %v316 = vld [vmem:[#allocation8 + $0x180] sm:$0xff]
    %v317 = vld [vmem:[#allocation8 + $0x188] sm:$0xff]
    %v318 = vld [vmem:[#allocation8 + $0x190] sm:$0xff]
    %v319 = vld [vmem:[#allocation8 + $0x198] sm:$0xff]
    %v320 = vld [vmem:[#allocation8 + $0x1a0] sm:$0xff]
    %v321 = vld [vmem:[#allocation8 + $0x1a8] sm:$0xff]
    %v322 = vld [vmem:[#allocation8 + $0x1b0] sm:$0xff]
    %v323 = vld [vmem:[#allocation8 + $0x1b8] sm:$0xff]
    %v324 = vld [vmem:[#allocation8 + $0x1c0] sm:$0xff]
    %v325 = vld [vmem:[#allocation8 + $0x1c8] sm:$0xff]
    %v326 = vld [vmem:[#allocation8 + $0x1d0] sm:$0xff]
    %v327 = vld [vmem:[#allocation8 + $0x1d8] sm:$0xff]
    %v328 = vld [vmem:[#allocation8 + $0x1e0] sm:$0xff]
    %v329 = vld [vmem:[#allocation8 + $0x1e8] sm:$0xff]
    %v330 = vld [vmem:[#allocation8 + $0x1f0] sm:$0xff]
    %v331 = vld [vmem:[#allocation8 + $0x1f8] sm:$0xff]
    %v332 = vld [vmem:[%s4] sm:$0x3]
    %v334 = vperm.slane %v332, 0
    %v335 = vperm.slane %v332, 1
    %v402 = vunpack.c.l.b16 %v268
    %v403 = vunpack.c.h.b16 %v268
    %v404 = vunpack.c.l.b16 %v269
    %v405 = vunpack.c.h.b16 %v269
    %v406 = vunpack.c.l.b16 %v270
    %v407 = vunpack.c.h.b16 %v270
    %v408 = vunpack.c.l.b16 %v271
    %v409 = vunpack.c.h.b16 %v271
    %v410 = vunpack.c.l.b16 %v272
    %v411 = vunpack.c.h.b16 %v272
    %v412 = vunpack.c.l.b16 %v273
    %v413 = vunpack.c.h.b16 %v273
    %v414 = vunpack.c.l.b16 %v274
    %v415 = vunpack.c.h.b16 %v274
    %v416 = vunpack.c.l.b16 %v275
    %v417 = vunpack.c.h.b16 %v275
    %v418 = vunpack.c.l.b16 %v276
    %v419 = vunpack.c.h.b16 %v276
    %v420 = vunpack.c.l.b16 %v277
    %v421 = vunpack.c.h.b16 %v277
    %v422 = vunpack.c.l.b16 %v278
    %v423 = vunpack.c.h.b16 %v278
    %v424 = vunpack.c.l.b16 %v279
    %v425 = vunpack.c.h.b16 %v279
    %v426 = vunpack.c.l.b16 %v280
    %v427 = vunpack.c.h.b16 %v280
    %v428 = vunpack.c.l.b16 %v281
    %v429 = vunpack.c.h.b16 %v281
    %v430 = vunpack.c.l.b16 %v282
    %v431 = vunpack.c.h.b16 %v282
    %v432 = vunpack.c.l.b16 %v283
    %v433 = vunpack.c.h.b16 %v283
    %v434 = vunpack.c.l.b16 %v284
    %v435 = vunpack.c.h.b16 %v284
    %v436 = vunpack.c.l.b16 %v285
    %v437 = vunpack.c.h.b16 %v285
    %v438 = vunpack.c.l.b16 %v286
    %v439 = vunpack.c.h.b16 %v286
    %v440 = vunpack.c.l.b16 %v287
    %v441 = vunpack.c.h.b16 %v287
    %v442 = vunpack.c.l.b16 %v288
    %v443 = vunpack.c.h.b16 %v288
    %v444 = vunpack.c.l.b16 %v289
    %v445 = vunpack.c.h.b16 %v289
    %v446 = vunpack.c.l.b16 %v290
    %v447 = vunpack.c.h.b16 %v290
    %v448 = vunpack.c.l.b16 %v291
    %v449 = vunpack.c.h.b16 %v291
    %v450 = vunpack.c.l.b16 %v292
    %v451 = vunpack.c.h.b16 %v292
    %v452 = vunpack.c.l.b16 %v293
    %v453 = vunpack.c.h.b16 %v293
    %v454 = vunpack.c.l.b16 %v294
    %v455 = vunpack.c.h.b16 %v294
    %v456 = vunpack.c.l.b16 %v295
    %v457 = vunpack.c.h.b16 %v295
    %v458 = vunpack.c.l.b16 %v296
    %v459 = vunpack.c.h.b16 %v296
    %v460 = vunpack.c.l.b16 %v297
    %v461 = vunpack.c.h.b16 %v297
    %v462 = vunpack.c.l.b16 %v298
    %v463 = vunpack.c.h.b16 %v298
    %v464 = vunpack.c.l.b16 %v299
    %v465 = vunpack.c.h.b16 %v299
    %v466 = vunpack.c.l.b16 %v300
    %v467 = vunpack.c.h.b16 %v300
    %v468 = vunpack.c.l.b16 %v301
    %v469 = vunpack.c.h.b16 %v301
    %v470 = vunpack.c.l.b16 %v302
    %v471 = vunpack.c.h.b16 %v302
    %v472 = vunpack.c.l.b16 %v303
    %v473 = vunpack.c.h.b16 %v303
    %v474 = vunpack.c.l.b16 %v304
    %v475 = vunpack.c.h.b16 %v304
    %v476 = vunpack.c.l.b16 %v305
    %v477 = vunpack.c.h.b16 %v305
    %v478 = vunpack.c.l.b16 %v306
    %v479 = vunpack.c.h.b16 %v306
    %v480 = vunpack.c.l.b16 %v307
    %v481 = vunpack.c.h.b16 %v307
    %v482 = vunpack.c.l.b16 %v308
    %v483 = vunpack.c.h.b16 %v308
    %v484 = vunpack.c.l.b16 %v309
    %v485 = vunpack.c.h.b16 %v309
    %v486 = vunpack.c.l.b16 %v310
    %v487 = vunpack.c.h.b16 %v310
    %v488 = vunpack.c.l.b16 %v311
    %v489 = vunpack.c.h.b16 %v311
    %v490 = vunpack.c.l.b16 %v312
    %v491 = vunpack.c.h.b16 %v312
    %v492 = vunpack.c.l.b16 %v313
    %v493 = vunpack.c.h.b16 %v313
    %v494 = vunpack.c.l.b16 %v314
    %v495 = vunpack.c.h.b16 %v314
    %v496 = vunpack.c.l.b16 %v315
    %v497 = vunpack.c.h.b16 %v315
    %v498 = vunpack.c.l.b16 %v316
    %v499 = vunpack.c.h.b16 %v316
    %v500 = vunpack.c.l.b16 %v317
    %v501 = vunpack.c.h.b16 %v317
    %v502 = vunpack.c.l.b16 %v318
    %v503 = vunpack.c.h.b16 %v318
    %v504 = vunpack.c.l.b16 %v319
    %v505 = vunpack.c.h.b16 %v319
    %v506 = vunpack.c.l.b16 %v320
    %v507 = vunpack.c.h.b16 %v320
    %v508 = vunpack.c.l.b16 %v321
    %v509 = vunpack.c.h.b16 %v321
    %v510 = vunpack.c.l.b16 %v322
    %v511 = vunpack.c.h.b16 %v322
    %v512 = vunpack.c.l.b16 %v323
    %v513 = vunpack.c.h.b16 %v323
    %v514 = vunpack.c.l.b16 %v324
    %v515 = vunpack.c.h.b16 %v324
    %v516 = vunpack.c.l.b16 %v325
    %v517 = vunpack.c.h.b16 %v325
    %v518 = vunpack.c.l.b16 %v326
    %v519 = vunpack.c.h.b16 %v326
    %v520 = vunpack.c.l.b16 %v327
    %v521 = vunpack.c.h.b16 %v327
    %v522 = vunpack.c.l.b16 %v328
    %v523 = vunpack.c.h.b16 %v328
    %v524 = vunpack.c.l.b16 %v329
    %v525 = vunpack.c.h.b16 %v329
    %v526 = vunpack.c.l.b16 %v330
    %v527 = vunpack.c.h.b16 %v330
    %v528 = vunpack.c.l.b16 %v331
    %v529 = vunpack.c.h.b16 %v331
    %v530 = vpack.c.b16 %v404, %v402
    %v531 = vpack.c.b16 %v405, %v403
    %v532 = vpack.c.b16 %v408, %v406
    %v533 = vpack.c.b16 %v409, %v407
    %v534 = vpack.c.b16 %v412, %v410
    %v535 = vpack.c.b16 %v413, %v411
    %v536 = vpack.c.b16 %v416, %v414
    %v537 = vpack.c.b16 %v417, %v415
    %v538 = vpack.c.b16 %v420, %v418
    %v539 = vpack.c.b16 %v421, %v419
    %v540 = vpack.c.b16 %v424, %v422
    %v541 = vpack.c.b16 %v425, %v423
    %v542 = vpack.c.b16 %v428, %v426
    %v543 = vpack.c.b16 %v429, %v427
    %v544 = vpack.c.b16 %v432, %v430
    %v545 = vpack.c.b16 %v433, %v431
    %v546 = vpack.c.b16 %v436, %v434
    %v547 = vpack.c.b16 %v437, %v435
    %v548 = vpack.c.b16 %v440, %v438
    %v549 = vpack.c.b16 %v441, %v439
    %v550 = vpack.c.b16 %v444, %v442
    %v551 = vpack.c.b16 %v445, %v443
    %v552 = vpack.c.b16 %v448, %v446
    %v553 = vpack.c.b16 %v449, %v447
    %v554 = vpack.c.b16 %v452, %v450
    %v555 = vpack.c.b16 %v453, %v451
    %v556 = vpack.c.b16 %v456, %v454
    %v557 = vpack.c.b16 %v457, %v455
    %v558 = vpack.c.b16 %v460, %v458
    %v559 = vpack.c.b16 %v461, %v459
    %v560 = vpack.c.b16 %v464, %v462
    %v561 = vpack.c.b16 %v465, %v463
    %v562 = vpack.c.b16 %v468, %v466
    %v563 = vpack.c.b16 %v469, %v467
    %v564 = vpack.c.b16 %v472, %v470
    %v565 = vpack.c.b16 %v473, %v471
    %v566 = vpack.c.b16 %v476, %v474
    %v567 = vpack.c.b16 %v477, %v475
    %v568 = vpack.c.b16 %v480, %v478
    %v569 = vpack.c.b16 %v481, %v479
    %v570 = vpack.c.b16 %v484, %v482
    %v571 = vpack.c.b16 %v485, %v483
    %v572 = vpack.c.b16 %v488, %v486
    %v573 = vpack.c.b16 %v489, %v487
    %v574 = vpack.c.b16 %v492, %v490
    %v575 = vpack.c.b16 %v493, %v491
    %v576 = vpack.c.b16 %v496, %v494
    %v577 = vpack.c.b16 %v497, %v495
    %v578 = vpack.c.b16 %v500, %v498
    %v579 = vpack.c.b16 %v501, %v499
    %v580 = vpack.c.b16 %v504, %v502
    %v581 = vpack.c.b16 %v505, %v503
    %v582 = vpack.c.b16 %v508, %v506
    %v583 = vpack.c.b16 %v509, %v507
    %v584 = vpack.c.b16 %v512, %v510
    %v585 = vpack.c.b16 %v513, %v511
    %v586 = vpack.c.b16 %v516, %v514
    %v587 = vpack.c.b16 %v517, %v515
    %v588 = vpack.c.b16 %v520, %v518
    %v589 = vpack.c.b16 %v521, %v519
    %v590 = vpack.c.b16 %v524, %v522
    %v591 = vpack.c.b16 %v525, %v523
    %v592 = vpack.c.b16 %v528, %v526
    %v593 = vpack.c.b16 %v529, %v527
    %658 = vmatpush.bf16.msra.mxu0 %v544
    %659 = vmatpush.bf16.msra.mxu0 %v542
    %660 = vmatpush.bf16.msra.mxu0 %v540
    %661 = vmatpush.bf16.msra.mxu0 %v538
    %662 = vmatpush.bf16.msra.mxu0 %v536
    %663 = vmatpush.bf16.msra.mxu0 %v534
    %664 = vmatpush.bf16.msra.mxu0 %v532
    %665 = vmatpush.bf16.msra.mxu0 %v530
    %666 = vmatmul.bf16.gmra.mxu0 %v264
    %v667 = vpop.f32.mrf.mxu0
    %v668 = vadd.f32 %v334, %v667
    %v669 = vpop.f32.mrf.mxu0
    %670 = vdwg.mxu0
    %671 = vmatpush.bf16.msra.mxu0 %v560
    %672 = vmatpush.bf16.msra.mxu0 %v558
    %673 = vmatpush.bf16.msra.mxu0 %v556
    %674 = vmatpush.bf16.msra.mxu0 %v554
    %675 = vmatpush.bf16.msra.mxu0 %v552
    %676 = vmatpush.bf16.msra.mxu0 %v550
    %677 = vmatpush.bf16.msra.mxu0 %v548
    %678 = vmatpush.bf16.msra.mxu0 %v546
    %679 = vmatmul.bf16.gmra.mxu0 %v265
    %v680 = vpop.f32.mrf.mxu0
    %v681 = vadd.f32 %v668, %v680
    %v682 = vpop.f32.mrf.mxu0
    %683 = vdwg.mxu0
    %684 = vmatpush.bf16.msra.mxu0 %v576
    %685 = vmatpush.bf16.msra.mxu0 %v574
    %686 = vmatpush.bf16.msra.mxu0 %v572
    %687 = vmatpush.bf16.msra.mxu0 %v570
    %688 = vmatpush.bf16.msra.mxu0 %v568
    %689 = vmatpush.bf16.msra.mxu0 %v566
    %690 = vmatpush.bf16.msra.mxu0 %v564
    %691 = vmatpush.bf16.msra.mxu0 %v562
    %692 = vmatmul.bf16.gmra.mxu0 %v266
    %v693 = vpop.f32.mrf.mxu0
    %v694 = vadd.f32 %v681, %v693
    %v695 = vpop.f32.mrf.mxu0
    %696 = vdwg.mxu0
    %697 = vmatpush.bf16.msra.mxu0 %v592
    %698 = vmatpush.bf16.msra.mxu0 %v590
    %699 = vmatpush.bf16.msra.mxu0 %v588
    %700 = vmatpush.bf16.msra.mxu0 %v586
    %701 = vmatpush.bf16.msra.mxu0 %v584
    %702 = vmatpush.bf16.msra.mxu0 %v582
    %703 = vmatpush.bf16.msra.mxu0 %v580
    %704 = vmatpush.bf16.msra.mxu0 %v578
    %705 = vmatmul.bf16.gmra.mxu0 %v267
    %v706 = vpop.f32.mrf.mxu0
    %v707 = vadd.f32 %v694, %v706
    %v708 = vpop.f32.mrf.mxu0
    %709 = vdwg.mxu0
    %710 = vmatpush.bf16.msra.mxu0 %v545
    %711 = vmatpush.bf16.msra.mxu0 %v543
    %712 = vmatpush.bf16.msra.mxu0 %v541
    %713 = vmatpush.bf16.msra.mxu0 %v539
    %714 = vmatpush.bf16.msra.mxu0 %v537
    %715 = vmatpush.bf16.msra.mxu0 %v535
    %716 = vmatpush.bf16.msra.mxu0 %v533
    %717 = vmatpush.bf16.msra.mxu0 %v531
    %718 = vmatmul.bf16.gmra.mxu0 %v264
    %v719 = vpop.f32.mrf.mxu0
    %v720 = vadd.f32 %v335, %v719
    %v721 = vpop.f32.mrf.mxu0
    %722 = vdwg.mxu0
    %723 = vmatpush.bf16.msra.mxu0 %v561
    %724 = vmatpush.bf16.msra.mxu0 %v559
    %725 = vmatpush.bf16.msra.mxu0 %v557
    %726 = vmatpush.bf16.msra.mxu0 %v555
    %727 = vmatpush.bf16.msra.mxu0 %v553
    %728 = vmatpush.bf16.msra.mxu0 %v551
    %729 = vmatpush.bf16.msra.mxu0 %v549
    %730 = vmatpush.bf16.msra.mxu0 %v547
    %731 = vmatmul.bf16.gmra.mxu0 %v265
    %v732 = vpop.f32.mrf.mxu0
    %v733 = vadd.f32 %v720, %v732
    %v734 = vpop.f32.mrf.mxu0
    %735 = vdwg.mxu0
    %736 = vmatpush.bf16.msra.mxu0 %v577
    %737 = vmatpush.bf16.msra.mxu0 %v575
    %738 = vmatpush.bf16.msra.mxu0 %v573
    %739 = vmatpush.bf16.msra.mxu0 %v571
    %740 = vmatpush.bf16.msra.mxu0 %v569
    %741 = vmatpush.bf16.msra.mxu0 %v567
    %742 = vmatpush.bf16.msra.mxu0 %v565
    %743 = vmatpush.bf16.msra.mxu0 %v563
    %744 = vmatmul.bf16.gmra.mxu0 %v266
    %v745 = vpop.f32.mrf.mxu0
    %v746 = vadd.f32 %v733, %v745
    %v747 = vpop.f32.mrf.mxu0
    %748 = vdwg.mxu0
    %749 = vmatpush.bf16.msra.mxu0 %v593
    %750 = vmatpush.bf16.msra.mxu0 %v591
    %751 = vmatpush.bf16.msra.mxu0 %v589
    %752 = vmatpush.bf16.msra.mxu0 %v587
    %753 = vmatpush.bf16.msra.mxu0 %v585
    %754 = vmatpush.bf16.msra.mxu0 %v583
    %755 = vmatpush.bf16.msra.mxu0 %v581
    %756 = vmatpush.bf16.msra.mxu0 %v579
    %757 = vmatmul.bf16.gmra.mxu0 %v267
    %v758 = vpop.f32.mrf.mxu0
    %v759 = vadd.f32 %v746, %v758
    %v760 = vpop.f32.mrf.mxu0
    %761 = vdwg.mxu0
    %v762 = vmax.f32 %v707, 0.0
    %v763 = vmax.f32 %v759, 0.0
    %v764 = vpack.c.bf16 %v762, %v762
    %v765 = vpack.c.bf16 %v763, %v763
    %v766 = vld [vmem:[#allocation10] sm:$0xf]
    %v767 = vld [vmem:[#allocation10 + $0x4] sm:$0xf]
    %v768 = vld [vmem:[#allocation10 + $0x8] sm:$0xf]
    %v769 = vld [vmem:[#allocation10 + $0xc] sm:$0xf]
    %v770 = vld [vmem:[#allocation10 + $0x10] sm:$0xf]
    %v771 = vld [vmem:[#allocation10 + $0x14] sm:$0xf]
    %v772 = vld [vmem:[#allocation10 + $0x18] sm:$0xf]
    %v773 = vld [vmem:[#allocation10 + $0x1c] sm:$0xf]
    %v774 = vld [vmem:[#allocation10 + $0x20] sm:$0xf]
    %v775 = vld [vmem:[#allocation10 + $0x24] sm:$0xf]
    %v776 = vld [vmem:[#allocation10 + $0x28] sm:$0xf]
    %v777 = vld [vmem:[#allocation10 + $0x2c] sm:$0xf]
    %v778 = vld [vmem:[#allocation10 + $0x30] sm:$0xf]
    %v779 = vld [vmem:[#allocation10 + $0x34] sm:$0xf]
    %v780 = vld [vmem:[#allocation10 + $0x38] sm:$0xf]
    %v781 = vld [vmem:[#allocation10 + $0x3c] sm:$0xf]
    %v782 = vld [vmem:[#allocation10 + $0x40] sm:$0xf]
    %v783 = vld [vmem:[#allocation10 + $0x44] sm:$0xf]
    %v784 = vld [vmem:[#allocation10 + $0x48] sm:$0xf]
    %v785 = vld [vmem:[#allocation10 + $0x4c] sm:$0xf]
    %v786 = vld [vmem:[#allocation10 + $0x50] sm:$0xf]
    %v787 = vld [vmem:[#allocation10 + $0x54] sm:$0xf]
    %v788 = vld [vmem:[#allocation10 + $0x58] sm:$0xf]
    %v789 = vld [vmem:[#allocation10 + $0x5c] sm:$0xf]
    %v790 = vld [vmem:[#allocation10 + $0x60] sm:$0xf]
    %v791 = vld [vmem:[#allocation10 + $0x64] sm:$0xf]
    %v792 = vld [vmem:[#allocation10 + $0x68] sm:$0xf]
    %v793 = vld [vmem:[#allocation10 + $0x6c] sm:$0xf]
    %v794 = vld [vmem:[#allocation10 + $0x70] sm:$0xf]
    %v795 = vld [vmem:[#allocation10 + $0x74] sm:$0xf]
    %v796 = vld [vmem:[#allocation10 + $0x78] sm:$0xf]
    %v797 = vld [vmem:[#allocation10 + $0x7c] sm:$0xf]
    %v798 = vld [vmem:[%s6] sm:$0x1]
    %v800 = vperm.slane %v798, 0
    %v834 = vunpack.c.l.b16 %v766
    %v835 = vunpack.c.l.b16 %v767
    %v836 = vunpack.c.l.b16 %v768
    %v837 = vunpack.c.l.b16 %v769
    %v838 = vunpack.c.l.b16 %v770
    %v839 = vunpack.c.l.b16 %v771
    %v840 = vunpack.c.l.b16 %v772
    %v841 = vunpack.c.l.b16 %v773
    %v842 = vunpack.c.l.b16 %v774
    %v843 = vunpack.c.l.b16 %v775
    %v844 = vunpack.c.l.b16 %v776
    %v845 = vunpack.c.l.b16 %v777
    %v846 = vunpack.c.l.b16 %v778
    %v847 = vunpack.c.l.b16 %v779
    %v848 = vunpack.c.l.b16 %v780
    %v849 = vunpack.c.l.b16 %v781
    %v850 = vunpack.c.l.b16 %v782
    %v851 = vunpack.c.l.b16 %v783
    %v852 = vunpack.c.l.b16 %v784
    %v853 = vunpack.c.l.b16 %v785
    %v854 = vunpack.c.l.b16 %v786
    %v855 = vunpack.c.l.b16 %v787
    %v856 = vunpack.c.l.b16 %v788
    %v857 = vunpack.c.l.b16 %v789
    %v858 = vunpack.c.l.b16 %v790
    %v859 = vunpack.c.l.b16 %v791
    %v860 = vunpack.c.l.b16 %v792
    %v861 = vunpack.c.l.b16 %v793
    %v862 = vunpack.c.l.b16 %v794
    %v863 = vunpack.c.l.b16 %v795
    %v864 = vunpack.c.l.b16 %v796
    %v865 = vunpack.c.l.b16 %v797
    %v866 = vpack.c.b16 %v835, %v834
    %v867 = vpack.c.b16 %v837, %v836
    %v868 = vpack.c.b16 %v839, %v838
    %v869 = vpack.c.b16 %v841, %v840
    %v870 = vpack.c.b16 %v843, %v842
    %v871 = vpack.c.b16 %v845, %v844
    %v872 = vpack.c.b16 %v847, %v846
    %v873 = vpack.c.b16 %v849, %v848
    %v874 = vpack.c.b16 %v851, %v850
    %v875 = vpack.c.b16 %v853, %v852
    %v876 = vpack.c.b16 %v855, %v854
    %v877 = vpack.c.b16 %v857, %v856
    %v878 = vpack.c.b16 %v859, %v858
    %v879 = vpack.c.b16 %v861, %v860
    %v880 = vpack.c.b16 %v863, %v862
    %v881 = vpack.c.b16 %v865, %v864
    %898 = vmatpush.bf16.msra.mxu0 %v873
    %899 = vmatpush.bf16.msra.mxu0 %v872
    %900 = vmatpush.bf16.msra.mxu0 %v871
    %901 = vmatpush.bf16.msra.mxu0 %v870
    %902 = vmatpush.bf16.msra.mxu0 %v869
    %903 = vmatpush.bf16.msra.mxu0 %v868
    %904 = vmatpush.bf16.msra.mxu0 %v867
    %905 = vmatpush.bf16.msra.mxu0 %v866
    %906 = vmatmul.bf16.gmra.mxu0 %v764
    %v907 = vpop.f32.mrf.mxu0
    %v908 = vadd.f32 %v800, %v907
    %v909 = vpop.f32.mrf.mxu0
    %910 = vdwg.mxu0
    %911 = vmatpush.bf16.msra.mxu0 %v881
    %912 = vmatpush.bf16.msra.mxu0 %v880
    %913 = vmatpush.bf16.msra.mxu0 %v879
    %914 = vmatpush.bf16.msra.mxu0 %v878
    %915 = vmatpush.bf16.msra.mxu0 %v877
    %916 = vmatpush.bf16.msra.mxu0 %v876
    %917 = vmatpush.bf16.msra.mxu0 %v875
    %918 = vmatpush.bf16.msra.mxu0 %v874
    %919 = vmatmul.bf16.gmra.mxu0 %v765
    %v920 = vpop.f32.mrf.mxu0
    %v921 = vadd.f32 %v908, %v920
    %v922 = vpop.f32.mrf.mxu0
    %923 = vdwg.mxu0
    %v924 = vmax.f32 %v921, 0.0
    %v925 = vpack.c.bf16 %v924, %v924
    %v926 = vld [vmem:[#allocation11] sm:$0xf]
    %v927 = vld [vmem:[#allocation11 + $0x4] sm:$0xf]
    %v928 = vld [vmem:[#allocation11 + $0x8] sm:$0xf]
    %v929 = vld [vmem:[#allocation11 + $0xc] sm:$0xf]
    %v930 = vld [vmem:[#allocation11 + $0x10] sm:$0xf]
    %v931 = vld [vmem:[#allocation11 + $0x14] sm:$0xf]
    %v932 = vld [vmem:[#allocation11 + $0x18] sm:$0xf]
    %v933 = vld [vmem:[#allocation11 + $0x1c] sm:$0xf]
    %v934 = vld [vmem:[#allocation11 + $0x20] sm:$0xf]
    %v935 = vld [vmem:[#allocation11 + $0x24] sm:$0xf]
    %v936 = vld [vmem:[#allocation11 + $0x28] sm:$0xf]
    %v937 = vld [vmem:[#allocation11 + $0x2c] sm:$0xf]
    %v938 = vld [vmem:[#allocation11 + $0x30] sm:$0xf]
    %v939 = vld [vmem:[#allocation11 + $0x34] sm:$0xf]
    %v940 = vld [vmem:[#allocation11 + $0x38] sm:$0xf]
    %v941 = vld [vmem:[#allocation11 + $0x3c] sm:$0xf]
    %v942 = vld [vmem:[%s8] sm:$0x1]
    %v944 = vperm.slane %v942, 0
    %v962 = vunpack.c.l.b16 %v926
    %v963 = vunpack.c.l.b16 %v927
    %v964 = vunpack.c.l.b16 %v928
    %v965 = vunpack.c.l.b16 %v929
    %v966 = vunpack.c.l.b16 %v930
    %v967 = vunpack.c.l.b16 %v931
    %v968 = vunpack.c.l.b16 %v932
    %v969 = vunpack.c.l.b16 %v933
    %v970 = vunpack.c.l.b16 %v934
    %v971 = vunpack.c.l.b16 %v935
    %v972 = vunpack.c.l.b16 %v936
    %v973 = vunpack.c.l.b16 %v937
    %v974 = vunpack.c.l.b16 %v938
    %v975 = vunpack.c.l.b16 %v939
    %v976 = vunpack.c.l.b16 %v940
    %v977 = vunpack.c.l.b16 %v941
    %v978 = vpack.c.b16 %v963, %v962
    %v979 = vpack.c.b16 %v965, %v964
    %v980 = vpack.c.b16 %v967, %v966
    %v981 = vpack.c.b16 %v969, %v968
    %v982 = vpack.c.b16 %v971, %v970
    %v983 = vpack.c.b16 %v973, %v972
    %v984 = vpack.c.b16 %v975, %v974
    %v985 = vpack.c.b16 %v977, %v976
    %994 = vmatpush.bf16.msra.mxu0 %v985
    %995 = vmatpush.bf16.msra.mxu0 %v984
    %996 = vmatpush.bf16.msra.mxu0 %v983
    %997 = vmatpush.bf16.msra.mxu0 %v982
    %998 = vmatpush.bf16.msra.mxu0 %v981
    %999 = vmatpush.bf16.msra.mxu0 %v980
    %1000 = vmatpush.bf16.msra.mxu0 %v979
    %1001 = vmatpush.bf16.msra.mxu0 %v978
    %1002 = vmatmul.bf16.gmra.mxu0 %v925
    %v1003 = vpop.f32.mrf.mxu0
    %v1004 = vadd.f32 %v944, %v1003
    %v1005 = vpop.f32.mrf.mxu0
    %1006 = vdwg.mxu0
    %v1007 = vmax.f32 %v1004, 0.0
    %v1008 = vpack.c.bf16 %v1007, %v1007
    %v1009 = vld [vmem:[#allocation13] sm:$0xf]
    %v1010 = vld [vmem:[#allocation13 + $0x4] sm:$0xf]
    %v1011 = vld [vmem:[#allocation13 + $0x8] sm:$0xf]
    %v1012 = vld [vmem:[#allocation13 + $0xc] sm:$0xf]
    %v1013 = vld [vmem:[#allocation13 + $0x10] sm:$0xf]
    %v1014 = vld [vmem:[#allocation13 + $0x14] sm:$0xf]
    %v1015 = vld [vmem:[#allocation13 + $0x18] sm:$0xf]
    %v1016 = vld [vmem:[#allocation13 + $0x1c] sm:$0xf]
    %v1017 = vld [vmem:[#allocation13 + $0x20] sm:$0xf]
    %v1018 = vld [vmem:[#allocation13 + $0x24] sm:$0xf]
    %v1019 = vld [vmem:[#allocation13 + $0x28] sm:$0xf]
    %v1020 = vld [vmem:[#allocation13 + $0x2c] sm:$0xf]
    %v1021 = vld [vmem:[#allocation13 + $0x30] sm:$0xf]
    %v1022 = vld [vmem:[#allocation13 + $0x34] sm:$0xf]
    %v1023 = vld [vmem:[#allocation13 + $0x38] sm:$0xf]
    %v1024 = vld [vmem:[#allocation13 + $0x3c] sm:$0xf]
    %v1025 = vld [vmem:[%s10] sm:$0x1]
    %v1027 = vperm.slane %v1025, 0
    %v1045 = vunpack.c.l.b16 %v1009
    %v1046 = vunpack.c.l.b16 %v1010
    %v1047 = vunpack.c.l.b16 %v1011
    %v1048 = vunpack.c.l.b16 %v1012
    %v1049 = vunpack.c.l.b16 %v1013
    %v1050 = vunpack.c.l.b16 %v1014
    %v1051 = vunpack.c.l.b16 %v1015
    %v1052 = vunpack.c.l.b16 %v1016
    %v1053 = vunpack.c.l.b16 %v1017
    %v1054 = vunpack.c.l.b16 %v1018
    %v1055 = vunpack.c.l.b16 %v1019
    %v1056 = vunpack.c.l.b16 %v1020
    %v1057 = vunpack.c.l.b16 %v1021
    %v1058 = vunpack.c.l.b16 %v1022
    %v1059 = vunpack.c.l.b16 %v1023
    %v1060 = vunpack.c.l.b16 %v1024
    %v1061 = vpack.c.b16 %v1046, %v1045
    %v1062 = vpack.c.b16 %v1048, %v1047
    %v1063 = vpack.c.b16 %v1050, %v1049
    %v1064 = vpack.c.b16 %v1052, %v1051
    %v1065 = vpack.c.b16 %v1054, %v1053
    %v1066 = vpack.c.b16 %v1056, %v1055
    %v1067 = vpack.c.b16 %v1058, %v1057
    %v1068 = vpack.c.b16 %v1060, %v1059
    %1077 = vmatpush.bf16.msra.mxu0 %v1068
    %1078 = vmatpush.bf16.msra.mxu0 %v1067
    %1079 = vmatpush.bf16.msra.mxu0 %v1066
    %1080 = vmatpush.bf16.msra.mxu0 %v1065
    %1081 = vmatpush.bf16.msra.mxu0 %v1064
    %1082 = vmatpush.bf16.msra.mxu0 %v1063
    %1083 = vmatpush.bf16.msra.mxu0 %v1062
    %1084 = vmatpush.bf16.msra.mxu0 %v1061
    %1085 = vmatmul.bf16.gmra.mxu0 %v1008
    %v1086 = vpop.f32.mrf.mxu0
    %v1087 = vadd.f32 %v1027, %v1086
    %v1088 = vpop.f32.mrf.mxu0
    %1089 = vdwg.mxu0
    %v1090 = vlaneseq
    %v1091 = vand.u32 %v1090, 127
    %vm1092 = vcmp.lt.s32.totalorder %v1091, 8
    %v1093 = vsel %vm1092, %v1087, -inf
    %1094 = vmax.xlane.f32.xlu0 %v1093
    %v1095 = vpop.xlane.xlu0 %1094
    %v1096 = vsub.f32 %v1093, %v1095
    %v1097 = vmul.f32 %v1096, 1.442695
    %v1098 = vpow.pop %v1097
    %1099 = vadd.xlane.f32.xlu0 %v1098
    %v1100 = vpop.xlane.xlu0 %1099
    %v1101 = vrcp.pop %v1100
    %v1102 = vmul.f32 %v1098, %v1101
    %vm1103 = vcmp.eq.s32.totalorder %v1091, 8
    %v1104 = vsel %vm1103, %v1087, %v1102
    %1105 = vst [vmem:[#allocation14] sm:$0xff] %v1104
    // Predicated region
    $region74: #{tpu_custom_call.1} parent=1 // pred_check
      _
    $region75: #{tpu_custom_call.1} parent=1 // pred_check_branch
      %1107 = sbr.rel (0) target = $region77
    $region76: #{tpu_custom_call.1} parent=1 // pred_region
      %1109 = vsyncadd [#allocation4], 0
      %s1111 = sshll.u32 [#allocation14], 4
      %s1112 = int_to_ptr.vmem [resolvable:$true] %s1111
      %s1113 = sshll.u32 %s11, 4
      %s1114 = int_to_ptr.hbm [resolvable:$true] %s1113
      %1116 = dma.vmem_to_hbm [thread:$0]  %s1112, 128, %s1114, [#allocation4]
    $region77: #{tpu_custom_call.1} parent=1 // pred_fallthru
      _
    // Predicated region
    $region78: #{tpu_custom_call.1} parent=1 // pred_check
      _
    $region79: #{tpu_custom_call.1} parent=1 // pred_check_branch
      %1118 = sbr.rel (0) target = $region81
    $region80: #{tpu_custom_call.1} parent=1 // pred_region
      %1120 = dma.done [#allocation4], 128
    $region81: #{tpu_custom_call.1} parent=1 // pred_fallthru
      _
    %1121 = vsyncpa [#allocation3], 1
    %1122 = vsyncpa [#allocation6], 1
    %1123 = vsyncpa [#allocation9], 1
    %1124 = vsyncpa [#allocation12], 1
    %1125 = vsyncpa [#allocation4], 1

</llo_original>
